<compile_context>
chip_gen: v6e
topology: v6e:2x2x1
jax: 0.10.0
libtpu: 0.0.40
codegen_flags: <defaults>
</compile_context>

<pallas_src>
import functools

import jax
import jax.numpy as jnp
from jax import lax
from jax.experimental import pallas as pl
from jax.experimental.pallas import tpu as pltpu


def _round_up(x, m):
    return ((x + m - 1) // m) * m


def _blob_mlp_kernel(x_ref, w1_ref, b1_ref, w2_ref, b2_ref, w3_ref, b3_ref,
                     o_ref, *, chunk):
    """One batch tile.

    x_ref: (tile_n, in_f) row-major input tile.
    o_ref: (tile_n, out_f) row-major output tile.
    Intermediates h1/h2 are feature-major (hid, chunk): features on sublanes,
    batch on the 128-lane axis, so bias+ReLU run on dense vregs.
    """
    tile_n = o_ref.shape[0]
    n_chunks = tile_n // chunk                      # static (tile_n % chunk == 0)

    # Resident operands: load once, reuse across the inner loop.
    w1t = w1_ref[...]                               # (hid, in_f)  == W1^T
    b1 = b1_ref[...]                                # (hid, 1)
    w2t = w2_ref[...]                               # (hid, hid)   == W2^T
    b2 = b2_ref[...]                                # (hid, 1)
    w3 = w3_ref[...]                                # (hid, out_f) == W3
    b3 = b3_ref[...]                                # (1, out_f)

    def body(c, carry):
        r0 = pl.multiple_of(c * chunk, 128)
        xc = x_ref[pl.ds(r0, chunk), :]             # (chunk, in_f) row-major
        # Layer 1: relu(W1^T @ x^T + b1) -> (hid, chunk) feature-major.
        h1 = lax.dot_general(w1t, xc, (((1,), (1,)), ((), ())),
                             preferred_element_type=jnp.float32)
        h1 = jnp.maximum(h1 + b1, 0.0)
        # Layer 2: relu(W2^T @ h1 + b2) -> (hid, chunk).
        h2 = jnp.dot(w2t, h1, preferred_element_type=jnp.float32)
        h2 = jnp.maximum(h2 + b2, 0.0)
        # Layer 3: logits directly in row-major (chunk, out_f) = h2^T @ W3 + b3.
        oc = lax.dot_general(h2, w3, (((0,), (0,)), ((), ())),
                             preferred_element_type=jnp.float32)
        o_ref[pl.ds(r0, chunk), :] = (oc + b3).astype(o_ref.dtype)
        return carry

    lax.fori_loop(0, n_chunks, body, None, unroll=True)


def blob_model_forward(x, params, tile_n=8192, chunk=1024):
    """BlobModel forward.  x: (N, in_features) f32 -> (N, out_features) f32."""
    w1, b1, w2, b2, w3, b3 = params
    n, in_f = x.shape
    hid = w1.shape[1]
    out_f = w3.shape[1]

    # ---- tiling: multiples of 128 lanes; no padding of x or the output ------
    n128 = _round_up(n, 128)
    chunk = max(128, _round_up(min(int(chunk), int(tile_n)), 128))
    chunk = min(chunk, n128)                          # both multiples of 128
    tile_n = max(chunk, (min(int(tile_n), n128) // chunk) * chunk)
    # v7x has 2 TensorCores sharding the "parallel" grid axis: keep >= 2 tiles
    # when there is enough work (costs at most one extra ~0.35us step on
    # single-TC v5e/v6e, negligible).
    if n128 >= 2 * chunk:
        tile_n = min(tile_n, _round_up((n128 + 1) // 2, chunk))
    grid_n = pl.cdiv(n, tile_n)                       # partial last block OK

    # Tiny layout-only reshapes (<= 64 floats each). x / output stay untouched.
    w1t = w1.T                                        # (hid, in_f)
    w2t = w2.T                                        # (hid, hid)
    b1c = b1.reshape(hid, 1)
    b2c = b2.reshape(hid, 1)
    b3c = b3.reshape(1, out_f)

    const = lambda i: (0, 0)                          # resident across the grid
    resident = dict(pipeline_mode=pl.Buffered(1))     # no useless 2nd buffer

    flops = 2 * n * (in_f * hid + hid * hid + hid * out_f)
    bytes_accessed = 4 * (n * (in_f + out_f)
                          + in_f * hid + hid * hid + hid * out_f
                          + 2 * hid + out_f)

    out = pl.pallas_call(
        functools.partial(_blob_mlp_kernel, chunk=chunk),
        out_shape=jax.ShapeDtypeStruct((n, out_f), jnp.float32),
        grid=(grid_n,),
        in_specs=[
            pl.BlockSpec((tile_n, in_f), lambda i: (i, 0)),      # x batch tile
            pl.BlockSpec((hid, in_f), const, **resident),        # W1^T
            pl.BlockSpec((hid, 1), const, **resident),           # b1
            pl.BlockSpec((hid, hid), const, **resident),         # W2^T
            pl.BlockSpec((hid, 1), const, **resident),           # b2
            pl.BlockSpec((hid, out_f), const, **resident),       # W3
            pl.BlockSpec((1, out_f), const, **resident),         # b3
        ],
        out_specs=pl.BlockSpec((tile_n, out_f), lambda i: (i, 0)),
        compiler_params=pltpu.CompilerParams(
            dimension_semantics=("parallel",),        # v7x: shard over 2 TCs
            vmem_limit_bytes=32 * 1024 * 1024,
        ),
        cost_estimate=pl.CostEstimate(flops=flops, transcendentals=0,
                                      bytes_accessed=bytes_accessed),
    )(x, w1t, b1c, w2t, b2c, w3, b3c)
    return out


def init_blob_params(key, input_features, output_features, hidden_units=8):
    """PyTorch nn.Linear-style init (U(-k, k), k = 1/sqrt(fan_in)).
    Weights stored as (in, out), biases as (1, out)."""
    keys = jax.random.split(key, 6)

    def linear(kw, kb, fan_in, fan_out):
        bound = 1.0 / jnp.sqrt(fan_in)
        w = jax.random.uniform(kw, (fan_in, fan_out), jnp.float32, -bound, bound)
        b = jax.random.uniform(kb, (1, fan_out), jnp.float32, -bound, bound)
        return w, b

    w1, b1 = linear(keys[0], keys[1], input_features, hidden_units)
    w2, b2 = linear(keys[2], keys[3], hidden_units, hidden_units)
    w3, b3 = linear(keys[4], keys[5], hidden_units, output_features)
    return (w1, b1, w2, b2, w3, b3)


def blob_model_ref(x, params):
    """Pure-JAX reference for correctness checking."""
    w1, b1, w2, b2, w3, b3 = params
    h1 = jnp.maximum(x @ w1 + b1, 0.0)
    h2 = jnp.maximum(h1 @ w2 + b2, 0.0)
    return h2 @ w3 + b3


if __name__ == "__main__":
    # Shapes consistent with the blob multi-classification module:
    # 2 input features, 4 output classes, hidden_units=8.
    input_features, output_features, hidden_units = 2, 4, 8

    key = jax.random.PRNGKey(0)
    k_p, k_x, k_x2, k_x3 = jax.random.split(key, 4)
    params = init_blob_params(k_p, input_features, output_features, hidden_units)

    fwd = jax.jit(blob_model_forward, static_argnames=("tile_n", "chunk"))

    # 1) Tiny batch (single partial tile).
    batch = 8
    x = jax.random.normal(k_x, (batch, input_features), dtype=jnp.float32)
    out = jax.block_until_ready(fwd(x, params))
    ref = blob_model_ref(x, params)
    assert out.shape == (batch, output_features)
    assert jnp.allclose(out, ref, atol=1e-5, rtol=1e-5)

    # 2) Ragged batch with several grid steps (no padding, partial last block).
    batch2 = 300
    x2 = jax.random.normal(k_x2, (batch2, input_features), dtype=jnp.float32)
    out2 = jax.block_until_ready(fwd(x2, params, tile_n=128, chunk=128))
    ref2 = blob_model_ref(x2, params)
    assert out2.shape == (batch2, output_features)
    assert jnp.allclose(out2, ref2, atol=1e-5, rtol=1e-5)

    # 3) Default tiling path: multiple inner chunks per tile + 2 grid tiles.
    batch3 = 2500
    x3 = jax.random.normal(k_x3, (batch3, input_features), dtype=jnp.float32)
    out3 = jax.block_until_ready(fwd(x3, params))
    ref3 = blob_model_ref(x3, params)
    assert out3.shape == (batch3, output_features)
    assert jnp.allclose(out3, ref3, atol=1e-5, rtol=1e-5)

    print("KERNEL_OK")
</pallas_src>

<mosaic_0001>
module attributes {stable_mosaic.version = 11 : i64} {
  func.func @_blob_mlp_kernel(%arg0: i32, %arg1: memref<128x2xf32, #tpu.memory_space<vmem>>, %arg2: memref<8x2xf32, #tpu.memory_space<vmem>>, %arg3: memref<8x1xf32, #tpu.memory_space<vmem>>, %arg4: memref<8x8xf32, #tpu.memory_space<vmem>>, %arg5: memref<8x1xf32, #tpu.memory_space<vmem>>, %arg6: memref<8x4xf32, #tpu.memory_space<vmem>>, %arg7: memref<1x4xf32, #tpu.memory_space<vmem>>, %arg8: memref<128x4xf32, #tpu.memory_space<vmem>>) attributes {dimension_semantics = [#tpu.dimension_semantics<parallel>], iteration_bounds = array<i64: 1>, scalar_prefetch = 0 : i64, scratch_operands = 0 : i64, tpu.core_type = #tpu.core_type<tc>, window_params = [{transform_indices = @transform_0, window_bounds = array<i64: 128, 2>}, {pipeline_mode = #tpu.pipeline_mode<synchronous>, transform_indices = @transform_1, window_bounds = array<i64: 8, 2>}, {pipeline_mode = #tpu.pipeline_mode<synchronous>, transform_indices = @transform_2, window_bounds = array<i64: 8, 1>}, {pipeline_mode = #tpu.pipeline_mode<synchronous>, transform_indices = @transform_3, window_bounds = array<i64: 8, 8>}, {pipeline_mode = #tpu.pipeline_mode<synchronous>, transform_indices = @transform_4, window_bounds = array<i64: 8, 1>}, {pipeline_mode = #tpu.pipeline_mode<synchronous>, transform_indices = @transform_5, window_bounds = array<i64: 8, 4>}, {pipeline_mode = #tpu.pipeline_mode<synchronous>, transform_indices = @transform_6, window_bounds = array<i64: 1, 4>}, {transform_indices = @transform_7, window_bounds = array<i64: 128, 4>}]} {
    %c0 = arith.constant 0 : index
    %c0_0 = arith.constant 0 : index
    %0 = vector.load %arg2[%c0, %c0_0] : memref<8x2xf32, #tpu.memory_space<vmem>>, vector<8x2xf32>
    %c0_1 = arith.constant 0 : index
    %c0_2 = arith.constant 0 : index
    %1 = vector.load %arg3[%c0_1, %c0_2] : memref<8x1xf32, #tpu.memory_space<vmem>>, vector<8x1xf32>
    %c0_3 = arith.constant 0 : index
    %c0_4 = arith.constant 0 : index
    %2 = vector.load %arg4[%c0_3, %c0_4] : memref<8x8xf32, #tpu.memory_space<vmem>>, vector<8x8xf32>
    %c0_5 = arith.constant 0 : index
    %c0_6 = arith.constant 0 : index
    %3 = vector.load %arg5[%c0_5, %c0_6] : memref<8x1xf32, #tpu.memory_space<vmem>>, vector<8x1xf32>
    %c0_7 = arith.constant 0 : index
    %c0_8 = arith.constant 0 : index
    %4 = vector.load %arg6[%c0_7, %c0_8] : memref<8x4xf32, #tpu.memory_space<vmem>>, vector<8x4xf32>
    %c0_9 = arith.constant 0 : index
    %c0_10 = arith.constant 0 : index
    %5 = vector.load %arg7[%c0_9, %c0_10] : memref<1x4xf32, #tpu.memory_space<vmem>>, vector<1x4xf32>
    %c0_i32 = arith.constant 0 : i32
    %c128_i32 = arith.constant 128 : i32
    %6 = arith.muli %c0_i32, %c128_i32 : i32
    %7 = tpu.assume_multiple %6, 128 : i32
    %8 = arith.index_cast %7 : i32 to index
    %c0_11 = arith.constant 0 : index
    %9 = vector.load %arg1[%8, %c0_11] : memref<128x2xf32, #tpu.memory_space<vmem>>, vector<128x2xf32>
    %cst = arith.constant dense<0.000000e+00> : vector<8x128xf32>
    %10 = tpu.matmul %0, %9, %cst {dimension_numbers = #tpu.dot_dimension_numbers<[1], [1], [0], [0], [0, 0, 1, 0], [], []>} : vector<8x2xf32>, vector<128x2xf32>, vector<8x128xf32> -> vector<8x128xf32>
    %11 = vector.broadcast %1 : vector<8x1xf32> to vector<8x128xf32>
    %12 = arith.addf %10, %11 : vector<8x128xf32>
    %cst_12 = arith.constant 0.000000e+00 : f32
    %13 = vector.broadcast %cst_12 : f32 to vector<8x128xf32>
    %14 = arith.maximumf %12, %13 : vector<8x128xf32>
    %cst_13 = arith.constant dense<0.000000e+00> : vector<8x128xf32>
    %15 = tpu.matmul %2, %14, %cst_13 {dimension_numbers = #tpu.dot_dimension_numbers<[1], [0], [0], [1], [0, 0, 1, 1], [], []>} : vector<8x8xf32>, vector<8x128xf32>, vector<8x128xf32> -> vector<8x128xf32>
    %16 = vector.broadcast %3 : vector<8x1xf32> to vector<8x128xf32>
    %17 = arith.addf %15, %16 : vector<8x128xf32>
    %cst_14 = arith.constant 0.000000e+00 : f32
    %18 = vector.broadcast %cst_14 : f32 to vector<8x128xf32>
    %19 = arith.maximumf %17, %18 : vector<8x128xf32>
    %cst_15 = arith.constant dense<0.000000e+00> : vector<128x4xf32>
    %20 = tpu.matmul %19, %4, %cst_15 {dimension_numbers = #tpu.dot_dimension_numbers<[0], [0], [1], [1], [0, 1, 1, 1], [], []>} : vector<8x128xf32>, vector<8x4xf32>, vector<128x4xf32> -> vector<128x4xf32>
    %21 = vector.broadcast %5 : vector<1x4xf32> to vector<128x4xf32>
    %22 = arith.addf %20, %21 : vector<128x4xf32>
    %23 = arith.index_cast %7 : i32 to index
    %c0_16 = arith.constant 0 : index
    %24 = vector.load %arg8[%23, %c0_16] : memref<128x4xf32, #tpu.memory_space<vmem>>, vector<128x4xf32>
    tpu.vector_store %arg8[%23, %c0_16], %22 {strides = array<i32>} : memref<128x4xf32, #tpu.memory_space<vmem>>, vector<128x4xf32>,
    %c1_i32 = arith.constant 1 : i32
    return
  }
  func.func @transform_0(%arg0: i32) -> (i32, i32) {
    %c0_i32 = arith.constant 0 : i32
    %c0_i32_0 = arith.constant 0 : i32
    return %arg0, %c0_i32 : i32, i32
  }
  func.func @transform_1(%arg0: i32) -> (i32, i32) {
    %c0_i32 = arith.constant 0 : i32
    %c0_i32_0 = arith.constant 0 : i32
    %c0_i32_1 = arith.constant 0 : i32
    return %c0_i32, %c0_i32_0 : i32, i32
  }
  func.func @transform_2(%arg0: i32) -> (i32, i32) {
    %c0_i32 = arith.constant 0 : i32
    %c0_i32_0 = arith.constant 0 : i32
    %c0_i32_1 = arith.constant 0 : i32
    return %c0_i32, %c0_i32_0 : i32, i32
  }
  func.func @transform_3(%arg0: i32) -> (i32, i32) {
    %c0_i32 = arith.constant 0 : i32
    %c0_i32_0 = arith.constant 0 : i32
    %c0_i32_1 = arith.constant 0 : i32
    return %c0_i32, %c0_i32_0 : i32, i32
  }
  func.func @transform_4(%arg0: i32) -> (i32, i32) {
    %c0_i32 = arith.constant 0 : i32
    %c0_i32_0 = arith.constant 0 : i32
    %c0_i32_1 = arith.constant 0 : i32
    return %c0_i32, %c0_i32_0 : i32, i32
  }
  func.func @transform_5(%arg0: i32) -> (i32, i32) {
    %c0_i32 = arith.constant 0 : i32
    %c0_i32_0 = arith.constant 0 : i32
    %c0_i32_1 = arith.constant 0 : i32
    return %c0_i32, %c0_i32_0 : i32, i32
  }
  func.func @transform_6(%arg0: i32) -> (i32, i32) {
    %c0_i32 = arith.constant 0 : i32
    %c0_i32_0 = arith.constant 0 : i32
    %c0_i32_1 = arith.constant 0 : i32
    return %c0_i32, %c0_i32_0 : i32, i32
  }
  func.func @transform_7(%arg0: i32) -> (i32, i32) {
    %c0_i32 = arith.constant 0 : i32
    %c0_i32_0 = arith.constant 0 : i32
    return %arg0, %c0_i32 : i32, i32
  }
}

</mosaic_0001>

<llo_original>
// kernel: blob_model_forward.1
$region0: #{blob_model_forward.1}
  #allocation0 [shape = 'u32[]', space=smem, size = 0x4, offset = 0x4, fixed_abs, tag = 'smem constant byte address 0x4 - core index']
  #allocation1 [shape = 'u32[144,128]{1,0:T(1,128)}', space=vmem, size = 0x12000, scoped, tag = 'internal scratch']
  %s0 = inlined_call_operand.vmem [shape: f32[8,2], index: 0, kind: input, shape index: {}]
  %s1 = inlined_call_operand.vmem [shape: f32[8,2], index: 1, kind: input, shape index: {}]
  %s2 = inlined_call_operand.vmem [shape: f32[8,1], index: 2, kind: input, shape index: {}]
  %s3 = inlined_call_operand.vmem [shape: f32[8,8], index: 3, kind: input, shape index: {}]
  %s4 = inlined_call_operand.vmem [shape: f32[8,1], index: 4, kind: input, shape index: {}]
  %s5 = inlined_call_operand.vmem [shape: f32[8,4], index: 5, kind: input, shape index: {}]
  %s6 = inlined_call_operand.vmem [shape: f32[1,4], index: 6, kind: input, shape index: {}]
  %s7 = inlined_call_operand.vmem [shape: f32[8,4], index: 7, kind: output, shape index: {}]
  %s8 = sld [smem:[#allocation0]]
  $region72: #{blob_model_forward.1} parent=0
    _
  %s10 = ssub.s32 1, %s8
  %s11 = scalar_select 0, %s10, %s8
  $region1: #{blob_model_forward.1} parent=0
    #allocation2 [shape = 'u8[65536]{0}', space=vmem, size = 0x10000, scoped, tag = 'output window, operand 0, single buffered']
    // Predicated region
    $region2: #{blob_model_forward.1} parent=1 // pred_check
      _
    $region3: #{blob_model_forward.1} parent=1 // pred_check_branch
      %13 = sbr.rel (0) target = $region5
    $region4: #{blob_model_forward.1} parent=1 // pred_region
      _
    $region5: #{blob_model_forward.1} parent=1 // pred_fallthru
      _
    // Predicated region
    $region6: #{blob_model_forward.1} parent=1 // pred_check
      _
    $region7: #{blob_model_forward.1} parent=1 // pred_check_branch
      %15 = sbr.rel (0) target = $region9
    $region8: #{blob_model_forward.1} parent=1 // pred_region
      _
    $region9: #{blob_model_forward.1} parent=1 // pred_fallthru
      _
    // Predicated region
    $region10: #{blob_model_forward.1} parent=1 // pred_check
      _
    $region11: #{blob_model_forward.1} parent=1 // pred_check_branch
      %17 = sbr.rel (0) target = $region13
    $region12: #{blob_model_forward.1} parent=1 // pred_region
      _
    $region13: #{blob_model_forward.1} parent=1 // pred_fallthru
      _
    // Predicated region
    $region14: #{blob_model_forward.1} parent=1 // pred_check
      _
    $region15: #{blob_model_forward.1} parent=1 // pred_check_branch
      %19 = sbr.rel (0) target = $region17
    $region16: #{blob_model_forward.1} parent=1 // pred_region
      _
    $region17: #{blob_model_forward.1} parent=1 // pred_fallthru
      _
    // Predicated region
    $region18: #{blob_model_forward.1} parent=1 // pred_check
      _
    $region19: #{blob_model_forward.1} parent=1 // pred_check_branch
      %21 = sbr.rel (0) target = $region21
    $region20: #{blob_model_forward.1} parent=1 // pred_region
      _
    $region21: #{blob_model_forward.1} parent=1 // pred_fallthru
      _
    // Predicated region
    $region22: #{blob_model_forward.1} parent=1 // pred_check
      _
    $region23: #{blob_model_forward.1} parent=1 // pred_check_branch
      %23 = sbr.rel (0) target = $region25
    $region24: #{blob_model_forward.1} parent=1 // pred_region
      _
    $region25: #{blob_model_forward.1} parent=1 // pred_fallthru
      _
    // Predicated region
    $region26: #{blob_model_forward.1} parent=1 // pred_check
      _
    $region27: #{blob_model_forward.1} parent=1 // pred_check_branch
      %25 = sbr.rel (0) target = $region29
    $region28: #{blob_model_forward.1} parent=1 // pred_region
      _
    $region29: #{blob_model_forward.1} parent=1 // pred_fallthru
      _
    %v26 = vld [vmem:[%s1] sm:$0xff]
    %v27 = vld [vmem:[%s2] sm:$0xff]
    %v28 = vld [vmem:[%s3] sm:$0xff]
    %v29 = vld [vmem:[%s4] sm:$0xff]
    %v30 = vld [vmem:[%s5] sm:$0xff]
    %v31 = vld [vmem:[%s6] sm:$0x1]
    %v32 = vld [vmem:[%s0] sm:$0xff]
    %v33 = vld [vmem:[%s0 + $0x8] sm:$0xff]
    %v34 = vld [vmem:[%s0 + $0x10] sm:$0xff]
    %v35 = vld [vmem:[%s0 + $0x18] sm:$0xff]
    %v36 = vld [vmem:[%s0 + $0x20] sm:$0xff]
    %v37 = vld [vmem:[%s0 + $0x28] sm:$0xff]
    %v38 = vld [vmem:[%s0 + $0x30] sm:$0xff]
    %v39 = vld [vmem:[%s0 + $0x38] sm:$0xff]
    %v40 = vld [vmem:[%s0 + $0x40] sm:$0xff]
    %v41 = vld [vmem:[%s0 + $0x48] sm:$0xff]
    %v42 = vld [vmem:[%s0 + $0x50] sm:$0xff]
    %v43 = vld [vmem:[%s0 + $0x58] sm:$0xff]
    %v44 = vld [vmem:[%s0 + $0x60] sm:$0xff]
    %v45 = vld [vmem:[%s0 + $0x68] sm:$0xff]
    %v46 = vld [vmem:[%s0 + $0x70] sm:$0xff]
    %v47 = vld [vmem:[%s0 + $0x78] sm:$0xff]
    %49 = vset.pattern.permute.xlu0 0
    %50 = vperm.xlu0 %49, %v27
    %v51 = vpop.permute.xlu0 %50
    %vm53 = vcmask 15360
    %v55 = vsel %vm53, %v26, 0
    %v58 = vsel %vm53, %v32, 0
    %v61 = vsel %vm53, %v33, 0
    %v64 = vsel %vm53, %v34, 0
    %v67 = vsel %vm53, %v35, 0
    %v70 = vsel %vm53, %v36, 0
    %v73 = vsel %vm53, %v37, 0
    %v76 = vsel %vm53, %v38, 0
    %v79 = vsel %vm53, %v39, 0
    %v82 = vsel %vm53, %v40, 0
    %v85 = vsel %vm53, %v41, 0
    %v88 = vsel %vm53, %v42, 0
    %v91 = vsel %vm53, %v43, 0
    %v94 = vsel %vm53, %v44, 0
    %v97 = vsel %vm53, %v45, 0
    %v100 = vsel %vm53, %v46, 0
    %v103 = vsel %vm53, %v47, 0
    %105 = vmatprep.subr.mxu0 0.0
    %106 = vmatpush1.xpose.msra.mxu0 %v103
    %107 = vmatprep.subr.mxu0 0.0
    %108 = vmatpush1.xpose.msra.mxu0 %v100
    %109 = vmatprep.subr.mxu0 0.0
    %110 = vmatpush1.xpose.msra.mxu0 %v97
    %111 = vmatprep.subr.mxu0 0.0
    %112 = vmatpush1.xpose.msra.mxu0 %v94
    %113 = vmatprep.subr.mxu0 0.0
    %114 = vmatpush1.xpose.msra.mxu0 %v91
    %115 = vmatprep.subr.mxu0 0.0
    %116 = vmatpush1.xpose.msra.mxu0 %v88
    %117 = vmatprep.subr.mxu0 0.0
    %118 = vmatpush1.xpose.msra.mxu0 %v85
    %119 = vmatprep.subr.mxu0 0.0
    %120 = vmatpush1.xpose.msra.mxu0 %v82
    %121 = vmatprep.subr.mxu0 0.0
    %122 = vmatpush1.xpose.msra.mxu0 %v79
    %123 = vmatprep.subr.mxu0 0.0
    %124 = vmatpush1.xpose.msra.mxu0 %v76
    %125 = vmatprep.subr.mxu0 0.0
    %126 = vmatpush1.xpose.msra.mxu0 %v73
    %127 = vmatprep.subr.mxu0 0.0
    %128 = vmatpush1.xpose.msra.mxu0 %v70
    %129 = vmatprep.subr.mxu0 0.0
    %130 = vmatpush1.xpose.msra.mxu0 %v67
    %131 = vmatprep.subr.mxu0 0.0
    %132 = vmatpush1.xpose.msra.mxu0 %v64
    %133 = vmatprep.subr.mxu0 0.0
    %134 = vmatpush1.xpose.msra.mxu0 %v61
    %135 = vmatprep.subr.mxu0 0.0
    %136 = vmatpush1.xpose.msra.mxu0 %v58
    %137 = vmatprep.subr.mxu0 0.0
    %138 = vmatpush2.xpose.msra.mxu0 0.0
    %139 = vmatprep.subr.mxu0 0.0
    %140 = vmatpush2.xpose.msra.mxu0 0.0
    %141 = vmatprep.subr.mxu0 0.0
    %142 = vmatpush2.xpose.msra.mxu0 0.0
    %143 = vmatprep.subr.mxu0 0.0
    %144 = vmatpush2.xpose.msra.mxu0 0.0
    %145 = vmatprep.subr.mxu0 0.0
    %146 = vmatpush2.xpose.msra.mxu0 0.0
    %147 = vmatprep.subr.mxu0 0.0
    %148 = vmatpush2.xpose.msra.mxu0 0.0
    %149 = vmatprep.subr.mxu0 0.0
    %150 = vmatpush2.xpose.msra.mxu0 0.0
    %151 = vmatprep.subr.mxu0 0.0
    %152 = vmatpush2.xpose.msra.mxu0 0.0
    %153 = vmatprep.subr.mxu0 0.0
    %154 = vmatpush2.xpose.msra.mxu0 0.0
    %155 = vmatprep.subr.mxu0 0.0
    %156 = vmatpush2.xpose.msra.mxu0 0.0
    %157 = vmatprep.subr.mxu0 0.0
    %158 = vmatpush2.xpose.msra.mxu0 0.0
    %159 = vmatprep.subr.mxu0 0.0
    %160 = vmatpush2.xpose.msra.mxu0 0.0
    %161 = vmatprep.subr.mxu0 0.0
    %162 = vmatpush2.xpose.msra.mxu0 0.0
    %163 = vmatprep.subr.mxu0 0.0
    %164 = vmatpush2.xpose.msra.mxu0 0.0
    %165 = vmatprep.subr.mxu0 0.0
    %166 = vmatpush2.xpose.msra.mxu0 0.0
    %167 = vmatprep.subr.mxu0 0.0
    %168 = vmatpush2.xpose.msra.mxu0 0.0
    %169 = vmatprep.mubr.f32.mxu0 0.0
    %170 = vmatmul.mubr.f32.gmra.mxu0 %v55
    %v171 = vpop.f32.mrf.mxu0
    %v172 = vadd.f32 %v51, %v171
    %v173 = vpop.f32.mrf.mxu0
    %174 = vdwg.mxu0
    %v175 = vmax.f32 %v172, 0.0
    %177 = vset.pattern.permute.xlu0 0
    %178 = vperm.xlu0 %177, %v29
    %v179 = vpop.permute.xlu0 %178
    %vm181 = vcmask 64512
    %v183 = vsel %vm181, %v28, 0
    %185 = vmatprep.subr.mxu0 0.0
    %186 = vmatpush1.msra.mxu0 0.0
    %187 = vmatprep.subr.mxu0 0.0
    %188 = vmatpush1.msra.mxu0 0.0
    %189 = vmatprep.subr.mxu0 0.0
    %190 = vmatpush1.msra.mxu0 0.0
    %191 = vmatprep.subr.mxu0 0.0
    %192 = vmatpush1.msra.mxu0 0.0
    %193 = vmatprep.subr.mxu0 0.0
    %194 = vmatpush1.msra.mxu0 0.0
    %195 = vmatprep.subr.mxu0 0.0
    %196 = vmatpush1.msra.mxu0 0.0
    %197 = vmatprep.subr.mxu0 0.0
    %198 = vmatpush1.msra.mxu0 0.0
    %199 = vmatprep.subr.mxu0 0.0
    %200 = vmatpush1.msra.mxu0 0.0
    %201 = vmatprep.subr.mxu0 0.0
    %202 = vmatpush1.msra.mxu0 0.0
    %203 = vmatprep.subr.mxu0 0.0
    %204 = vmatpush1.msra.mxu0 0.0
    %205 = vmatprep.subr.mxu0 0.0
    %206 = vmatpush1.msra.mxu0 0.0
    %207 = vmatprep.subr.mxu0 0.0
    %208 = vmatpush1.msra.mxu0 0.0
    %209 = vmatprep.subr.mxu0 0.0
    %210 = vmatpush1.msra.mxu0 0.0
    %211 = vmatprep.subr.mxu0 0.0
    %212 = vmatpush1.msra.mxu0 0.0
    %213 = vmatprep.subr.mxu0 0.0
    %214 = vmatpush1.msra.mxu0 0.0
    %215 = vmatprep.subr.mxu0 0.0
    %216 = vmatpush1.msra.mxu0 %v175
    %217 = vmatprep.subr.mxu0 0.0
    %218 = vmatpush2.msra.mxu0 0.0
    %219 = vmatprep.subr.mxu0 0.0
    %220 = vmatpush2.msra.mxu0 0.0
    %221 = vmatprep.subr.mxu0 0.0
    %222 = vmatpush2.msra.mxu0 0.0
    %223 = vmatprep.subr.mxu0 0.0
    %224 = vmatpush2.msra.mxu0 0.0
    %225 = vmatprep.subr.mxu0 0.0
    %226 = vmatpush2.msra.mxu0 0.0
    %227 = vmatprep.subr.mxu0 0.0
    %228 = vmatpush2.msra.mxu0 0.0
    %229 = vmatprep.subr.mxu0 0.0
    %230 = vmatpush2.msra.mxu0 0.0
    %231 = vmatprep.subr.mxu0 0.0
    %232 = vmatpush2.msra.mxu0 0.0
    %233 = vmatprep.subr.mxu0 0.0
    %234 = vmatpush2.msra.mxu0 0.0
    %235 = vmatprep.subr.mxu0 0.0
    %236 = vmatpush2.msra.mxu0 0.0
    %237 = vmatprep.subr.mxu0 0.0
    %238 = vmatpush2.msra.mxu0 0.0
    %239 = vmatprep.subr.mxu0 0.0
    %240 = vmatpush2.msra.mxu0 0.0
    %241 = vmatprep.subr.mxu0 0.0
    %242 = vmatpush2.msra.mxu0 0.0
    %243 = vmatprep.subr.mxu0 0.0
    %244 = vmatpush2.msra.mxu0 0.0
    %245 = vmatprep.subr.mxu0 0.0
    %246 = vmatpush2.msra.mxu0 0.0
    %247 = vmatprep.subr.mxu0 0.0
    %248 = vmatpush2.msra.mxu0 0.0
    %249 = vmatprep.mubr.f32.mxu0 0.0
    %250 = vmatmul.mubr.f32.gmra.mxu0 %v183
    %v251 = vpop.f32.mrf.mxu0
    %v252 = vadd.f32 %v179, %v251
    %v253 = vpop.f32.mrf.mxu0
    %254 = vdwg.mxu0
    %v255 = vmax.f32 %v252, 0.0
    %v257 = vlaneseq
    %v258 = vshrl.u32 %v257, 7
    %v259 = vsub.s32 0, %v258
    %v260 = vrot.slane %v31, %v259
    %262 = vxpose.xlu0.b32.start [1/16] %v255, 128
    %263 = vxpose.xlu0.b32.cont [2/16] 0.0, 128
    %264 = vxpose.xlu0.b32.cont [3/16] 0.0, 128
    %265 = vxpose.xlu0.b32.cont [4/16] 0.0, 128
    %266 = vxpose.xlu0.b32.cont [5/16] 0.0, 128
    %267 = vxpose.xlu0.b32.cont [6/16] 0.0, 128
    %268 = vxpose.xlu0.b32.cont [7/16] 0.0, 128
    %269 = vxpose.xlu0.b32.cont [8/16] 0.0, 128
    %270 = vxpose.xlu0.b32.cont [9/16] 0.0, 128
    %271 = vxpose.xlu0.b32.cont [10/16] 0.0, 128
    %272 = vxpose.xlu0.b32.cont [11/16] 0.0, 128
    %273 = vxpose.xlu0.b32.cont [12/16] 0.0, 128
    %274 = vxpose.xlu0.b32.cont [13/16] 0.0, 128
    %275 = vxpose.xlu0.b32.cont [14/16] 0.0, 128
    %276 = vxpose.xlu0.b32.cont [15/16] 0.0, 128
    %277 = vxpose.xlu0.b32.end [16/16] 0.0, 128
    %v278 = vpop.trf.xlu0
    %v279 = vpop.trf.xlu0
    %v280 = vpop.trf.xlu0
    %v281 = vpop.trf.xlu0
    %v282 = vpop.trf.xlu0
    %v283 = vpop.trf.xlu0
    %v284 = vpop.trf.xlu0
    %v285 = vpop.trf.xlu0
    %v286 = vpop.trf.xlu0
    %v287 = vpop.trf.xlu0
    %v288 = vpop.trf.xlu0
    %v289 = vpop.trf.xlu0
    %v290 = vpop.trf.xlu0
    %v291 = vpop.trf.xlu0
    %v292 = vpop.trf.xlu0
    %v293 = vpop.trf.xlu0
    %v295 = vsel %vm181, %v278, 0
    %v298 = vsel %vm181, %v279, 0
    %v301 = vsel %vm181, %v280, 0
    %v304 = vsel %vm181, %v281, 0
    %v307 = vsel %vm181, %v282, 0
    %v310 = vsel %vm181, %v283, 0
    %v313 = vsel %vm181, %v284, 0
    %v316 = vsel %vm181, %v285, 0
    %v319 = vsel %vm181, %v286, 0
    %v322 = vsel %vm181, %v287, 0
    %v325 = vsel %vm181, %v288, 0
    %v328 = vsel %vm181, %v289, 0
    %v331 = vsel %vm181, %v290, 0
    %v334 = vsel %vm181, %v291, 0
    %v337 = vsel %vm181, %v292, 0
    %v340 = vsel %vm181, %v293, 0
    %342 = vmatprep.subr.mxu0 0.0
    %343 = vmatpush1.msra.mxu0 0.0
    %344 = vmatprep.subr.mxu0 0.0
    %345 = vmatpush1.msra.mxu0 0.0
    %346 = vmatprep.subr.mxu0 0.0
    %347 = vmatpush1.msra.mxu0 0.0
    %348 = vmatprep.subr.mxu0 0.0
    %349 = vmatpush1.msra.mxu0 0.0
    %350 = vmatprep.subr.mxu0 0.0
    %351 = vmatpush1.msra.mxu0 0.0
    %352 = vmatprep.subr.mxu0 0.0
    %353 = vmatpush1.msra.mxu0 0.0
    %354 = vmatprep.subr.mxu0 0.0
    %355 = vmatpush1.msra.mxu0 0.0
    %356 = vmatprep.subr.mxu0 0.0
    %357 = vmatpush1.msra.mxu0 0.0
    %358 = vmatprep.subr.mxu0 0.0
    %359 = vmatpush1.msra.mxu0 0.0
    %360 = vmatprep.subr.mxu0 0.0
    %361 = vmatpush1.msra.mxu0 0.0
    %362 = vmatprep.subr.mxu0 0.0
    %363 = vmatpush1.msra.mxu0 0.0
    %364 = vmatprep.subr.mxu0 0.0
    %365 = vmatpush1.msra.mxu0 0.0
    %366 = vmatprep.subr.mxu0 0.0
    %367 = vmatpush1.msra.mxu0 0.0
    %368 = vmatprep.subr.mxu0 0.0
    %369 = vmatpush1.msra.mxu0 0.0
    %370 = vmatprep.subr.mxu0 0.0
    %371 = vmatpush1.msra.mxu0 0.0
    %372 = vmatprep.subr.mxu0 0.0
    %373 = vmatpush1.msra.mxu0 %v30
    %374 = vmatprep.subr.mxu0 0.0
    %375 = vmatpush2.msra.mxu0 0.0
    %376 = vmatprep.subr.mxu0 0.0
    %377 = vmatpush2.msra.mxu0 0.0
    %378 = vmatprep.subr.mxu0 0.0
    %379 = vmatpush2.msra.mxu0 0.0
    %380 = vmatprep.subr.mxu0 0.0
    %381 = vmatpush2.msra.mxu0 0.0
    %382 = vmatprep.subr.mxu0 0.0
    %383 = vmatpush2.msra.mxu0 0.0
    %384 = vmatprep.subr.mxu0 0.0
    %385 = vmatpush2.msra.mxu0 0.0
    %386 = vmatprep.subr.mxu0 0.0
    %387 = vmatpush2.msra.mxu0 0.0
    %388 = vmatprep.subr.mxu0 0.0
    %389 = vmatpush2.msra.mxu0 0.0
    %390 = vmatprep.subr.mxu0 0.0
    %391 = vmatpush2.msra.mxu0 0.0
    %392 = vmatprep.subr.mxu0 0.0
    %393 = vmatpush2.msra.mxu0 0.0
    %394 = vmatprep.subr.mxu0 0.0
    %395 = vmatpush2.msra.mxu0 0.0
    %396 = vmatprep.subr.mxu0 0.0
    %397 = vmatpush2.msra.mxu0 0.0
    %398 = vmatprep.subr.mxu0 0.0
    %399 = vmatpush2.msra.mxu0 0.0
    %400 = vmatprep.subr.mxu0 0.0
    %401 = vmatpush2.msra.mxu0 0.0
    %402 = vmatprep.subr.mxu0 0.0
    %403 = vmatpush2.msra.mxu0 0.0
    %404 = vmatprep.subr.mxu0 0.0
    %405 = vmatpush2.msra.mxu0 0.0
    %406 = vmatprep.mubr.f32.mxu0 0.0
    %407 = vmatmul.mubr.f32.gmra.mxu0 %v295
    %v408 = vpop.f32.mrf.mxu0
    %v409 = vadd.f32 %v260, %v408
    %v410 = vpop.f32.mrf.mxu0
    %411 = vmatprep.mubr.f32.mxu0 0.0
    %412 = vmatmul.mubr.f32.gmra.mxu0 %v298
    %v413 = vpop.f32.mrf.mxu0
    %v414 = vadd.f32 %v260, %v413
    %v415 = vpop.f32.mrf.mxu0
    %416 = vmatprep.mubr.f32.mxu0 0.0
    %417 = vmatmul.mubr.f32.gmra.mxu0 %v301
    %v418 = vpop.f32.mrf.mxu0
    %v419 = vadd.f32 %v260, %v418
    %v420 = vpop.f32.mrf.mxu0
    %421 = vmatprep.mubr.f32.mxu0 0.0
    %422 = vmatmul.mubr.f32.gmra.mxu0 %v304
    %v423 = vpop.f32.mrf.mxu0
    %v424 = vadd.f32 %v260, %v423
    %v425 = vpop.f32.mrf.mxu0
    %426 = vmatprep.mubr.f32.mxu0 0.0
    %427 = vmatmul.mubr.f32.gmra.mxu0 %v307
    %v428 = vpop.f32.mrf.mxu0
    %v429 = vadd.f32 %v260, %v428
    %v430 = vpop.f32.mrf.mxu0
    %431 = vmatprep.mubr.f32.mxu0 0.0
    %432 = vmatmul.mubr.f32.gmra.mxu0 %v310
    %v433 = vpop.f32.mrf.mxu0
    %v434 = vadd.f32 %v260, %v433
    %v435 = vpop.f32.mrf.mxu0
    %436 = vmatprep.mubr.f32.mxu0 0.0
    %437 = vmatmul.mubr.f32.gmra.mxu0 %v313
    %v438 = vpop.f32.mrf.mxu0
    %v439 = vadd.f32 %v260, %v438
    %v440 = vpop.f32.mrf.mxu0
    %441 = vmatprep.mubr.f32.mxu0 0.0
    %442 = vmatmul.mubr.f32.gmra.mxu0 %v316
    %v443 = vpop.f32.mrf.mxu0
    %v444 = vadd.f32 %v260, %v443
    %v445 = vpop.f32.mrf.mxu0
    %446 = vmatprep.mubr.f32.mxu0 0.0
    %447 = vmatmul.mubr.f32.gmra.mxu0 %v319
    %v448 = vpop.f32.mrf.mxu0
    %v449 = vadd.f32 %v260, %v448
    %v450 = vpop.f32.mrf.mxu0
    %451 = vmatprep.mubr.f32.mxu0 0.0
    %452 = vmatmul.mubr.f32.gmra.mxu0 %v322
    %v453 = vpop.f32.mrf.mxu0
    %v454 = vadd.f32 %v260, %v453
    %v455 = vpop.f32.mrf.mxu0
    %456 = vmatprep.mubr.f32.mxu0 0.0
    %457 = vmatmul.mubr.f32.gmra.mxu0 %v325
    %v458 = vpop.f32.mrf.mxu0
    %v459 = vadd.f32 %v260, %v458
    %v460 = vpop.f32.mrf.mxu0
    %461 = vmatprep.mubr.f32.mxu0 0.0
    %462 = vmatmul.mubr.f32.gmra.mxu0 %v328
    %v463 = vpop.f32.mrf.mxu0
    %v464 = vadd.f32 %v260, %v463
    %v465 = vpop.f32.mrf.mxu0
    %466 = vmatprep.mubr.f32.mxu0 0.0
    %467 = vmatmul.mubr.f32.gmra.mxu0 %v331
    %v468 = vpop.f32.mrf.mxu0
    %v469 = vadd.f32 %v260, %v468
    %v470 = vpop.f32.mrf.mxu0
    %471 = vmatprep.mubr.f32.mxu0 0.0
    %472 = vmatmul.mubr.f32.gmra.mxu0 %v334
    %v473 = vpop.f32.mrf.mxu0
    %v474 = vadd.f32 %v260, %v473
    %v475 = vpop.f32.mrf.mxu0
    %476 = vmatprep.mubr.f32.mxu0 0.0
    %477 = vmatmul.mubr.f32.gmra.mxu0 %v337
    %v478 = vpop.f32.mrf.mxu0
    %v479 = vadd.f32 %v260, %v478
    %v480 = vpop.f32.mrf.mxu0
    %481 = vmatprep.mubr.f32.mxu0 0.0
    %482 = vmatmul.mubr.f32.gmra.mxu0 %v340
    %v483 = vpop.f32.mrf.mxu0
    %v484 = vadd.f32 %v260, %v483
    %v485 = vpop.f32.mrf.mxu0
    %486 = vdwg.mxu0
    %vm487 = vcmask 31744
    %488 = vst.msk [vmem:[#allocation2] sm:$0xff] %vm487, %v409
    %489 = vst.msk [vmem:[#allocation2 + $0x8] sm:$0xff] %vm487, %v414
    %490 = vst.msk [vmem:[#allocation2 + $0x10] sm:$0xff] %vm487, %v419
    %491 = vst.msk [vmem:[#allocation2 + $0x18] sm:$0xff] %vm487, %v424
    %492 = vst.msk [vmem:[#allocation2 + $0x20] sm:$0xff] %vm487, %v429
    %493 = vst.msk [vmem:[#allocation2 + $0x28] sm:$0xff] %vm487, %v434
    %494 = vst.msk [vmem:[#allocation2 + $0x30] sm:$0xff] %vm487, %v439
    %495 = vst.msk [vmem:[#allocation2 + $0x38] sm:$0xff] %vm487, %v444
    %496 = vst.msk [vmem:[#allocation2 + $0x40] sm:$0xff] %vm487, %v449
    %497 = vst.msk [vmem:[#allocation2 + $0x48] sm:$0xff] %vm487, %v454
    %498 = vst.msk [vmem:[#allocation2 + $0x50] sm:$0xff] %vm487, %v459
    %499 = vst.msk [vmem:[#allocation2 + $0x58] sm:$0xff] %vm487, %v464
    %500 = vst.msk [vmem:[#allocation2 + $0x60] sm:$0xff] %vm487, %v469
    %501 = vst.msk [vmem:[#allocation2 + $0x68] sm:$0xff] %vm487, %v474
    %502 = vst.msk [vmem:[#allocation2 + $0x70] sm:$0xff] %vm487, %v479
    %503 = vst.msk [vmem:[#allocation2 + $0x78] sm:$0xff] %vm487, %v484
    // Predicated region
    $region30: #{blob_model_forward.1} parent=1 // pred_check
      _
    $region31: #{blob_model_forward.1} parent=1 // pred_check_branch
      %505 = sbr.rel (0) target = $region33
    $region32: #{blob_model_forward.1} parent=1 // pred_region
      // Predicated region
      $region34: #{blob_model_forward.1} parent=32 // pred_check
        _
      $region35: #{blob_model_forward.1} parent=32 // pred_check_branch
        %507 = sbr.rel (0) target = $region37
      $region36: #{blob_model_forward.1} parent=32 // pred_region
        // Predicated region
        $region38: #{blob_model_forward.1} parent=36 // pred_check
          _
        $region39: #{blob_model_forward.1} parent=36 // pred_check_branch
          %509 = sbr.rel (0) target = $region41
        $region40: #{blob_model_forward.1} parent=36 // pred_region
          // Predicated region
          $region53: #{blob_model_forward.1} parent=40 // pred_check
            _
          $region54: #{blob_model_forward.1} parent=40 // pred_check_branch
            %525 = sbr.rel (0) target = $region56
          $region55: #{blob_model_forward.1} parent=40 // pred_region
            loop: start=0, step=1, limit=1
            $region57: #{blob_model_forward.1} parent=55 // loop_pre_header
              _
            $region58: #{blob_model_forward.1} parent=55 // loop_header
              %s527 = sphi 0, %s531
              %p528 = scmp.ge.s32.totalorder %s527, 1
              %s532 = sphi [#allocation2], [#allocation2]
              %s533 = sphi %s7, %s7
            $region59: #{blob_model_forward.1} parent=55 // loop_header_branch
              %530 = sbr.rel (%p528) target = $region63
            $region60: #{blob_model_forward.1} parent=55 // loop_body
              %v534 = vld [vmem:[%s532] sm:$0xff]
              %535 = vst [vmem:[%s533] sm:$0xff] %v534
            $region61: #{blob_model_forward.1} parent=55 // loop_footer
              %s531 = sadd.s32 1, %s527
            $region62: #{blob_model_forward.1} parent=55 // loop_footer_branch
              %526 = sbr.rel target = $region58
            $region63: #{blob_model_forward.1} parent=55 // loop_exit
              _
          $region56: #{blob_model_forward.1} parent=40 // pred_fallthru
            _
          // Predicated region
          $region64: #{blob_model_forward.1} parent=40 // pred_check
            _
          $region65: #{blob_model_forward.1} parent=40 // pred_check_branch
            %537 = sbr.rel target = $region67
          $region66: #{blob_model_forward.1} parent=40 // pred_region
            _
          $region67: #{blob_model_forward.1} parent=40 // pred_fallthru
            _
        $region41: #{blob_model_forward.1} parent=36 // pred_fallthru
          _
        // Predicated region
        $region42: #{blob_model_forward.1} parent=36 // pred_check
          _
        $region43: #{blob_model_forward.1} parent=36 // pred_check_branch
          %511 = sbr.rel target = $region45
        $region44: #{blob_model_forward.1} parent=36 // pred_region
          %s513 = ssub.s32 256, 1
          loop: start=0, step=1, limit=1
          $region46: #{blob_model_forward.1} parent=44 // loop_pre_header
            _
          $region47: #{blob_model_forward.1} parent=44 // loop_header
            %s515 = sphi 0, %s519
            %p516 = scmp.ge.s32.totalorder %s515, 1
            %s520 = sphi [#allocation2], [#allocation2]
            %s521 = sphi %s7, %s7
          $region48: #{blob_model_forward.1} parent=44 // loop_header_branch
            %518 = sbr.rel (%p516) target = $region52
          $region49: #{blob_model_forward.1} parent=44 // loop_body
            %v522 = vld [vmem:[%s520] sm:%s513]
            %523 = vst [vmem:[%s521] sm:%s513] %v522
          $region50: #{blob_model_forward.1} parent=44 // loop_footer
            %s519 = sadd.s32 1, %s515
          $region51: #{blob_model_forward.1} parent=44 // loop_footer_branch
            %514 = sbr.rel target = $region47
          $region52: #{blob_model_forward.1} parent=44 // loop_exit
            _
        $region45: #{blob_model_forward.1} parent=36 // pred_fallthru
          _
      $region37: #{blob_model_forward.1} parent=32 // pred_fallthru
        _
      %538 = vnop
    $region33: #{blob_model_forward.1} parent=1 // pred_fallthru
      _
    // Predicated region
    $region68: #{blob_model_forward.1} parent=1 // pred_check
      _
    $region69: #{blob_model_forward.1} parent=1 // pred_check_branch
      %540 = sbr.rel (0) target = $region71
    $region70: #{blob_model_forward.1} parent=1 // pred_region
      _
    $region71: #{blob_model_forward.1} parent=1 // pred_fallthru
      _

</llo_original>
